<compile_context>
chip_gen: v7x
topology: tpu7x:2x2x1
jax: 0.10.0
libtpu: 0.0.40
codegen_flags: <defaults>
</compile_context>

<pallas_src>
import math

import jax
import jax.numpy as jnp
from jax.experimental import pallas as pl
from jax.experimental.pallas import tpu as pltpu  # noqa: F401  (TPU backend module)

BN_EPS = 1e-5
LANE = 128


def _make_fused_gcn_kernel(relu_flags):
    """All GCN layers in one kernel body; h never leaves VMEM between layers."""
    n_layers = len(relu_flags)

    def kernel(*refs):
        a_ref = refs[0]          # [N, N]      adjacency
        x_ref = refs[1]          # [N, FP]     padded input features
        o_ref = refs[-1]         # [N, FP]     padded output features

        A = a_ref[...]
        h = x_ref[...]

        for l in range(n_layers):                 # statically unrolled
            w = refs[2 + 3 * l][...]              # [FP, FP]  zero-padded W
            gamma = refs[3 + 3 * l][...]          # [1, FP]   BN weight (0 in pad cols)
            shift0 = refs[4 + 3 * l][...]         # [1, FP]   beta + bias (0 in pad cols)

            pin, pout = w.shape
            if pin > pout:
                # project to the narrower width before the N^2 contraction
                h = jnp.dot(A, jnp.dot(h, w, preferred_element_type=jnp.float32),
                            preferred_element_type=jnp.float32)
            else:
                h = jnp.dot(jnp.dot(A, h, preferred_element_type=jnp.float32), w,
                            preferred_element_type=jnp.float32)

            # BatchNorm1d (training mode, biased variance over nodes) + layer bias,
            # folded into a single scale/shift per column.
            mean = jnp.mean(h, axis=0, keepdims=True)
            var = jnp.mean(h * h, axis=0, keepdims=True) - mean * mean
            var = jnp.maximum(var, 0.0)                      # guard fp rounding
            scale = gamma * jax.lax.rsqrt(var + BN_EPS)      # [1, FP]
            shift = shift0 - mean * scale                    # [1, FP]
            h = h * scale + shift

            if relu_flags[l]:
                h = jnp.maximum(h, 0.0)

        o_ref[...] = h.astype(o_ref.dtype)

    return kernel


def gcn_forward(A, h, edge_index, params):
    """Mirrors GCN.forward: runs the conv stack, returns (h, None)."""
    del edge_index  # accepted but unused, exactly as in GCN.forward
    N = A.shape[0]
    nout_last = params[-1]["W"].shape[1]

    # One common padded feature width: lane-dense (multiple of 128).
    widths = [h.shape[1]]
    for p in params:
        widths += [p["W"].shape[0], p["W"].shape[1]]
    FP = pl.cdiv(max(widths), LANE) * LANE

    x_pad = jnp.zeros((N, FP), jnp.float32).at[:, : h.shape[1]].set(
        h.astype(jnp.float32))

    inputs = [A.astype(jnp.float32), x_pad]
    relu_flags = []
    for p in params:
        nin, nout = p["W"].shape
        w_pad = jnp.zeros((FP, FP), jnp.float32).at[:nin, :nout].set(p["W"])
        gamma_pad = jnp.zeros((1, FP), jnp.float32).at[0, :nout].set(p["gamma"])
        shift_pad = jnp.zeros((1, FP), jnp.float32).at[0, :nout].set(
            p["beta"] + p["bias"])
        inputs += [w_pad, gamma_pad, shift_pad]
        relu_flags.append(bool(p["relu"]))

    # Single-shot fused kernel: no grid / BlockSpec pipelining needed; A, padded h
    # and the tiny per-layer params all fit in VMEM at these sizes, and h stays
    # on-chip across the whole layer stack.
    # TODO(synk): for graphs where A no longer fits VMEM (N >~ a few thousand,
    # earlier on v7x's 64 MiB VMEM), row-tile A over a "parallel" grid axis with a
    # two-pass BatchNorm reduction instead of this monolithic block.
    out_pad = pl.pallas_call(
        _make_fused_gcn_kernel(tuple(relu_flags)),
        out_shape=jax.ShapeDtypeStruct((N, FP), jnp.float32),
    )(*inputs)

    return out_pad[:, :nout_last], None


def xavier_uniform(key, nin, nout):
    # torch.nn.init.xavier_uniform_: U(-a, a), a = sqrt(6 / (fan_in + fan_out))
    a = math.sqrt(6.0 / (nin + nout))
    return jax.random.uniform(key, (nin, nout), jnp.float32, minval=-a, maxval=a)


def make_gcn_params(key, nfeat, nhid, nlayers):
    """Deterministic parameter construction mirroring GCN.__init__ shapes."""
    dims = []
    if nlayers > 1:
        dims.append((nfeat, nhid, True))            # layer 0: ReLU
        for _ in range(nlayers - 2):
            dims.append((nhid, nhid, True))         # middle layers: ReLU
        dims.append((nhid, nhid, False))            # last layer: no activation
    else:
        dims.append((nfeat, nhid, False))

    params = []
    for (nin, nout, relu) in dims:
        key, wk = jax.random.split(key)
        params.append(dict(
            W=xavier_uniform(wk, nin, nout),
            bias=jnp.zeros((nout,), jnp.float32),    # bias.data.fill_(0.0)
            gamma=jnp.ones((nout,), jnp.float32),    # BatchNorm1d default weight
            beta=jnp.zeros((nout,), jnp.float32),    # BatchNorm1d default bias
            relu=relu,
        ))
    return params


def gcn_reference(A, h, params):
    """Pure-JAX reference of the same forward pass (for validation)."""
    hp = jnp.asarray(h, jnp.float32)
    hi = jax.lax.Precision.HIGHEST
    for p in params:
        hp = jnp.dot(jnp.dot(A, hp, precision=hi), p["W"], precision=hi)
        mean = jnp.mean(hp, axis=0, keepdims=True)
        var = jnp.mean((hp - mean) ** 2, axis=0, keepdims=True)   # biased var
        hp = (hp - mean) * jax.lax.rsqrt(var + BN_EPS) * p["gamma"] + p["beta"]
        hp = hp + p["bias"]
        if p["relu"]:
            hp = jnp.maximum(hp, 0.0)
    return hp


if __name__ == "__main__":
    key = jax.random.PRNGKey(0)
    k_a, k_h, k_e, k_p = jax.random.split(key, 4)

    N, nfeat, nhid, nlayers = 64, 32, 32, 2

    # Symmetric, row-normalized adjacency (dense), deterministic.
    A_raw = jax.random.uniform(k_a, (N, N), jnp.float32)
    A_sym = (A_raw + A_raw.T) * 0.5 + jnp.eye(N, dtype=jnp.float32)
    A = A_sym / jnp.sum(A_sym, axis=1, keepdims=True)

    h0 = jax.random.normal(k_h, (N, nfeat), jnp.float32)
    edge_index = jax.random.randint(k_e, (16, 2), 0, N)   # unused by forward

    params = make_gcn_params(k_p, nfeat, nhid, nlayers)

    out, aux = gcn_forward(A, h0, edge_index, params)
    out = jax.block_until_ready(out)

    assert out.shape == (N, nhid) and aux is None
    assert bool(jnp.all(jnp.isfinite(out)))

    ref = gcn_reference(A, h0, params)
    max_err = float(jnp.max(jnp.abs(out - ref)))
    assert max_err < 1e-2, f"mismatch vs reference: {max_err}"

    print("KERNEL_OK")
</pallas_src>

<mosaic_0001>
module attributes {stable_mosaic.version = 11 : i64} {
  func.func @kernel(%arg0: memref<64x64xf32, #tpu.memory_space<vmem>>, %arg1: memref<64x128xf32, #tpu.memory_space<vmem>>, %arg2: memref<128x128xf32, #tpu.memory_space<vmem>>, %arg3: memref<1x128xf32, #tpu.memory_space<vmem>>, %arg4: memref<1x128xf32, #tpu.memory_space<vmem>>, %arg5: memref<128x128xf32, #tpu.memory_space<vmem>>, %arg6: memref<1x128xf32, #tpu.memory_space<vmem>>, %arg7: memref<1x128xf32, #tpu.memory_space<vmem>>, %arg8: memref<64x128xf32, #tpu.memory_space<vmem>>) attributes {dimension_semantics = [], scalar_prefetch = 0 : i64, scratch_operands = 0 : i64, tpu.core_type = #tpu.core_type<tc>} {
    %c0 = arith.constant 0 : index
    %c0_0 = arith.constant 0 : index
    %0 = vector.load %arg0[%c0, %c0_0] : memref<64x64xf32, #tpu.memory_space<vmem>>, vector<64x64xf32>
    %c0_1 = arith.constant 0 : index
    %c0_2 = arith.constant 0 : index
    %1 = vector.load %arg1[%c0_1, %c0_2] : memref<64x128xf32, #tpu.memory_space<vmem>>, vector<64x128xf32>
    %c0_3 = arith.constant 0 : index
    %c0_4 = arith.constant 0 : index
    %2 = vector.load %arg2[%c0_3, %c0_4] : memref<128x128xf32, #tpu.memory_space<vmem>>, vector<128x128xf32>
    %c0_5 = arith.constant 0 : index
    %c0_6 = arith.constant 0 : index
    %3 = vector.load %arg3[%c0_5, %c0_6] : memref<1x128xf32, #tpu.memory_space<vmem>>, vector<1x128xf32>
    %c0_7 = arith.constant 0 : index
    %c0_8 = arith.constant 0 : index
    %4 = vector.load %arg4[%c0_7, %c0_8] : memref<1x128xf32, #tpu.memory_space<vmem>>, vector<1x128xf32>
    %cst = arith.constant dense<0.000000e+00> : vector<64x128xf32>
    %5 = tpu.matmul %0, %1, %cst {dimension_numbers = #tpu.dot_dimension_numbers<[1], [0], [0], [1], [0, 0, 1, 1], [], []>} : vector<64x64xf32>, vector<64x128xf32>, vector<64x128xf32> -> vector<64x128xf32>
    %cst_9 = arith.constant dense<0.000000e+00> : vector<64x128xf32>
    %6 = tpu.matmul %5, %2, %cst_9 {dimension_numbers = #tpu.dot_dimension_numbers<[1], [0], [0], [1], [0, 0, 1, 1], [], []>} : vector<64x128xf32>, vector<128x128xf32>, vector<64x128xf32> -> vector<64x128xf32>
    %cst_10 = arith.constant dense<0.000000e+00> : vector<128xf32>
    %7 = vector.multi_reduction <add>, %6, %cst_10 [0] : vector<64x128xf32> to vector<128xf32>
    %8 = vector.shape_cast %7 : vector<128xf32> to vector<1x128xf32>
    %cst_11 = arith.constant 6.400000e+01 : f32
    %9 = vector.broadcast %cst_11 : f32 to vector<1x128xf32>
    %10 = arith.divf %8, %9 : vector<1x128xf32>
    %11 = arith.mulf %6, %6 : vector<64x128xf32>
    %cst_12 = arith.constant dense<0.000000e+00> : vector<128xf32>
    %12 = vector.multi_reduction <add>, %11, %cst_12 [0] : vector<64x128xf32> to vector<128xf32>
    %13 = vector.shape_cast %12 : vector<128xf32> to vector<1x128xf32>
    %cst_13 = arith.constant 6.400000e+01 : f32
    %14 = vector.broadcast %cst_13 : f32 to vector<1x128xf32>
    %15 = arith.divf %13, %14 : vector<1x128xf32>
    %16 = arith.mulf %10, %10 : vector<1x128xf32>
    %17 = arith.subf %15, %16 : vector<1x128xf32>
    %cst_14 = arith.constant 0.000000e+00 : f32
    %18 = vector.broadcast %cst_14 : f32 to vector<1x128xf32>
    %19 = arith.maximumf %17, %18 : vector<1x128xf32>
    %cst_15 = arith.constant 9.99999974E-6 : f32
    %20 = vector.broadcast %cst_15 : f32 to vector<1x128xf32>
    %21 = arith.addf %19, %20 : vector<1x128xf32>
    %22 = math.rsqrt %21 : vector<1x128xf32>
    %23 = arith.mulf %3, %22 : vector<1x128xf32>
    %24 = arith.mulf %10, %23 : vector<1x128xf32>
    %25 = arith.subf %4, %24 : vector<1x128xf32>
    %26 = vector.broadcast %23 : vector<1x128xf32> to vector<64x128xf32>
    %27 = arith.mulf %6, %26 : vector<64x128xf32>
    %28 = vector.broadcast %25 : vector<1x128xf32> to vector<64x128xf32>
    %29 = arith.addf %27, %28 : vector<64x128xf32>
    %cst_16 = arith.constant 0.000000e+00 : f32
    %30 = vector.broadcast %cst_16 : f32 to vector<64x128xf32>
    %31 = arith.maximumf %29, %30 : vector<64x128xf32>
    %c0_17 = arith.constant 0 : index
    %c0_18 = arith.constant 0 : index
    %32 = vector.load %arg5[%c0_17, %c0_18] : memref<128x128xf32, #tpu.memory_space<vmem>>, vector<128x128xf32>
    %c0_19 = arith.constant 0 : index
    %c0_20 = arith.constant 0 : index
    %33 = vector.load %arg6[%c0_19, %c0_20] : memref<1x128xf32, #tpu.memory_space<vmem>>, vector<1x128xf32>
    %c0_21 = arith.constant 0 : index
    %c0_22 = arith.constant 0 : index
    %34 = vector.load %arg7[%c0_21, %c0_22] : memref<1x128xf32, #tpu.memory_space<vmem>>, vector<1x128xf32>
    %cst_23 = arith.constant dense<0.000000e+00> : vector<64x128xf32>
    %35 = tpu.matmul %0, %31, %cst_23 {dimension_numbers = #tpu.dot_dimension_numbers<[1], [0], [0], [1], [0, 0, 1, 1], [], []>} : vector<64x64xf32>, vector<64x128xf32>, vector<64x128xf32> -> vector<64x128xf32>
    %cst_24 = arith.constant dense<0.000000e+00> : vector<64x128xf32>
    %36 = tpu.matmul %35, %32, %cst_24 {dimension_numbers = #tpu.dot_dimension_numbers<[1], [0], [0], [1], [0, 0, 1, 1], [], []>} : vector<64x128xf32>, vector<128x128xf32>, vector<64x128xf32> -> vector<64x128xf32>
    %cst_25 = arith.constant dense<0.000000e+00> : vector<128xf32>
    %37 = vector.multi_reduction <add>, %36, %cst_25 [0] : vector<64x128xf32> to vector<128xf32>
    %38 = vector.shape_cast %37 : vector<128xf32> to vector<1x128xf32>
    %cst_26 = arith.constant 6.400000e+01 : f32
    %39 = vector.broadcast %cst_26 : f32 to vector<1x128xf32>
    %40 = arith.divf %38, %39 : vector<1x128xf32>
    %41 = arith.mulf %36, %36 : vector<64x128xf32>
    %cst_27 = arith.constant dense<0.000000e+00> : vector<128xf32>
    %42 = vector.multi_reduction <add>, %41, %cst_27 [0] : vector<64x128xf32> to vector<128xf32>
    %43 = vector.shape_cast %42 : vector<128xf32> to vector<1x128xf32>
    %cst_28 = arith.constant 6.400000e+01 : f32
    %44 = vector.broadcast %cst_28 : f32 to vector<1x128xf32>
    %45 = arith.divf %43, %44 : vector<1x128xf32>
    %46 = arith.mulf %40, %40 : vector<1x128xf32>
    %47 = arith.subf %45, %46 : vector<1x128xf32>
    %cst_29 = arith.constant 0.000000e+00 : f32
    %48 = vector.broadcast %cst_29 : f32 to vector<1x128xf32>
    %49 = arith.maximumf %47, %48 : vector<1x128xf32>
    %cst_30 = arith.constant 9.99999974E-6 : f32
    %50 = vector.broadcast %cst_30 : f32 to vector<1x128xf32>
    %51 = arith.addf %49, %50 : vector<1x128xf32>
    %52 = math.rsqrt %51 : vector<1x128xf32>
    %53 = arith.mulf %33, %52 : vector<1x128xf32>
    %54 = arith.mulf %40, %53 : vector<1x128xf32>
    %55 = arith.subf %34, %54 : vector<1x128xf32>
    %56 = vector.broadcast %53 : vector<1x128xf32> to vector<64x128xf32>
    %57 = arith.mulf %36, %56 : vector<64x128xf32>
    %58 = vector.broadcast %55 : vector<1x128xf32> to vector<64x128xf32>
    %59 = arith.addf %57, %58 : vector<64x128xf32>
    %c0_31 = arith.constant 0 : index
    %c0_32 = arith.constant 0 : index
    %60 = vector.load %arg8[%c0_31, %c0_32] : memref<64x128xf32, #tpu.memory_space<vmem>>, vector<64x128xf32>
    tpu.vector_store %arg8[%c0_31, %c0_32], %59 {strides = array<i32>} : memref<64x128xf32, #tpu.memory_space<vmem>>, vector<64x128xf32>,
    return
  }
}

</mosaic_0001>

<llo_original>
// kernel: tpu_custom_call.1
$region0: #{tpu_custom_call.1}
  #allocation0 [shape = 'u32[]', space=smem, size = 0x4, offset = 0x4, fixed_abs, tag = 'smem constant byte address 0x4 - core index']
  #allocation1 [shape = 'u32[144,128]{1,0:T(1,128)}', space=vmem, size = 0x12000, scoped, tag = 'internal scratch']
  %s0 = inlined_call_operand.hbm [shape: f32[64,64], index: 0, kind: input, shape index: {}]
  %s1 = inlined_call_operand.hbm [shape: f32[64,128], index: 1, kind: input, shape index: {}]
  %s2 = inlined_call_operand.hbm [shape: f32[128,128], index: 2, kind: input, shape index: {}]
  %s3 = inlined_call_operand.vmem [shape: f32[1,128], index: 3, kind: input, shape index: {}]
  %s4 = inlined_call_operand.vmem [shape: f32[1,128], index: 4, kind: input, shape index: {}]
  %s5 = inlined_call_operand.hbm [shape: f32[128,128], index: 5, kind: input, shape index: {}]
  %s6 = inlined_call_operand.vmem [shape: f32[1,128], index: 6, kind: input, shape index: {}]
  %s7 = inlined_call_operand.vmem [shape: f32[1,128], index: 7, kind: input, shape index: {}]
  %s8 = inlined_call_operand.hbm [shape: f32[64,128], index: 8, kind: output, shape index: {}]
  %s9 = sld [smem:[#allocation0]]
  $region58: #{tpu_custom_call.1} parent=0
    _
  %s11 = ssub.s32 1, %s9
  %s12 = scalar_select 0, %s11, %s9
  $region1: #{tpu_custom_call.1} parent=0
    #allocation2 [shape = 'u8[32768]{0}', space=vmem, size = 0x8000, scoped, tag = 'input window, operand 0, single buffered']
    #allocation3 [shape = 's32[1]{0}', space=sflag, size = 0x4, scoped, tag = 'scoped memory for tpu_custom_call.1']
    #allocation4 [shape = 's32[1]{0}', space=sflag, size = 0x4, scoped, tag = 'scoped memory for tpu_custom_call.1']
    #allocation5 [shape = 'u8[32768]{0}', space=vmem, size = 0x8000, scoped, tag = 'input window, operand 1, single buffered']
    #allocation6 [shape = 's32[1]{0}', space=sflag, size = 0x4, scoped, tag = 'scoped memory for tpu_custom_call.1']
    #allocation7 [shape = 'u8[65536]{0}', space=vmem, size = 0x10000, scoped, tag = 'input window, operand 2, single buffered']
    #allocation8 [shape = 'u8[65536]{0}', space=vmem, size = 0x10000, scoped, tag = 'input window, operand 5, single buffered']
    #allocation9 [shape = 's32[1]{0}', space=sflag, size = 0x4, scoped, tag = 'scoped memory for tpu_custom_call.1']
    #allocation10 [shape = 'u8[32768]{0}', space=vmem, size = 0x8000, scoped, tag = 'output window, operand 0, single buffered']
    %13 = vsyncpa [#allocation3], 0
    %14 = vsyncpa [#allocation6], 0
    %15 = vsyncpa [#allocation9], 0
    %16 = vsyncpa [#allocation4], 0
    // Predicated region
    $region2: #{tpu_custom_call.1} parent=1 // pred_check
      _
    $region3: #{tpu_custom_call.1} parent=1 // pred_check_branch
      %18 = sbr.rel (0) target = $region5
    $region4: #{tpu_custom_call.1} parent=1 // pred_region
      %s20 = ssub.s32 1024, 1024
      %21 = vsyncadd [#allocation3], %s20
      %s22 = sshll.u32 [#allocation2], 4
      %s23 = int_to_ptr.vmem [resolvable:$true] %s22
      %28 = dma.hbm_to_vmem [thread:$0]  %s0, 1024, %s23, [#allocation3], 128, 128, 8
    $region5: #{tpu_custom_call.1} parent=1 // pred_fallthru
      _
    // Predicated region
    $region6: #{tpu_custom_call.1} parent=1 // pred_check
      _
    $region7: #{tpu_custom_call.1} parent=1 // pred_check_branch
      %30 = sbr.rel (0) target = $region9
    $region8: #{tpu_custom_call.1} parent=1 // pred_region
      %s32 = ssub.s32 1024, 1024
      %33 = vsyncadd [#allocation6], %s32
      %s34 = sshll.u32 [#allocation5], 4
      %s35 = int_to_ptr.vmem [resolvable:$true] %s34
      %40 = dma.hbm_to_vmem [thread:$0]  %s1, 1024, %s35, [#allocation6], 128, 128, 8
    $region9: #{tpu_custom_call.1} parent=1 // pred_fallthru
      _
    // Predicated region
    $region10: #{tpu_custom_call.1} parent=1 // pred_check
      _
    $region11: #{tpu_custom_call.1} parent=1 // pred_check_branch
      %42 = sbr.rel (0) target = $region13
    $region12: #{tpu_custom_call.1} parent=1 // pred_region
      %s44 = ssub.s32 2048, 2048
      %45 = vsyncadd [#allocation6], %s44
      %s46 = sshll.u32 [#allocation7], 4
      %s47 = int_to_ptr.vmem [resolvable:$true] %s46
      %52 = dma.hbm_to_vmem [thread:$0]  %s2, 2048, %s47, [#allocation6], 128, 128, 8
    $region13: #{tpu_custom_call.1} parent=1 // pred_fallthru
      _
    // Predicated region
    $region14: #{tpu_custom_call.1} parent=1 // pred_check
      _
    $region15: #{tpu_custom_call.1} parent=1 // pred_check_branch
      %54 = sbr.rel (0) target = $region17
    $region16: #{tpu_custom_call.1} parent=1 // pred_region
      _
    $region17: #{tpu_custom_call.1} parent=1 // pred_fallthru
      _
    // Predicated region
    $region18: #{tpu_custom_call.1} parent=1 // pred_check
      _
    $region19: #{tpu_custom_call.1} parent=1 // pred_check_branch
      %56 = sbr.rel (0) target = $region21
    $region20: #{tpu_custom_call.1} parent=1 // pred_region
      _
    $region21: #{tpu_custom_call.1} parent=1 // pred_fallthru
      _
    // Predicated region
    $region22: #{tpu_custom_call.1} parent=1 // pred_check
      _
    $region23: #{tpu_custom_call.1} parent=1 // pred_check_branch
      %58 = sbr.rel (0) target = $region25
    $region24: #{tpu_custom_call.1} parent=1 // pred_region
      %s60 = ssub.s32 2048, 2048
      %61 = vsyncadd [#allocation9], %s60
      %s62 = sshll.u32 [#allocation8], 4
      %s63 = int_to_ptr.vmem [resolvable:$true] %s62
      %68 = dma.hbm_to_vmem [thread:$0]  %s5, 2048, %s63, [#allocation9], 128, 128, 8
    $region25: #{tpu_custom_call.1} parent=1 // pred_fallthru
      _
    // Predicated region
    $region26: #{tpu_custom_call.1} parent=1 // pred_check
      _
    $region27: #{tpu_custom_call.1} parent=1 // pred_check_branch
      %70 = sbr.rel (0) target = $region29
    $region28: #{tpu_custom_call.1} parent=1 // pred_region
      _
    $region29: #{tpu_custom_call.1} parent=1 // pred_fallthru
      _
    // Predicated region
    $region30: #{tpu_custom_call.1} parent=1 // pred_check
      _
    $region31: #{tpu_custom_call.1} parent=1 // pred_check_branch
      %72 = sbr.rel (0) target = $region33
    $region32: #{tpu_custom_call.1} parent=1 // pred_region
      _
    $region33: #{tpu_custom_call.1} parent=1 // pred_fallthru
      _
    // Predicated region
    $region34: #{tpu_custom_call.1} parent=1 // pred_check
      _
    $region35: #{tpu_custom_call.1} parent=1 // pred_check_branch
      %74 = sbr.rel (0) target = $region37
    $region36: #{tpu_custom_call.1} parent=1 // pred_region
      %75 = dma.done [#allocation3], 1024
    $region37: #{tpu_custom_call.1} parent=1 // pred_fallthru
      _
    // Predicated region
    $region38: #{tpu_custom_call.1} parent=1 // pred_check
      _
    $region39: #{tpu_custom_call.1} parent=1 // pred_check_branch
      %77 = sbr.rel (0) target = $region41
    $region40: #{tpu_custom_call.1} parent=1 // pred_region
      %78 = dma.done [#allocation6], 1024
    $region41: #{tpu_custom_call.1} parent=1 // pred_fallthru
      _
    // Predicated region
    $region42: #{tpu_custom_call.1} parent=1 // pred_check
      _
    $region43: #{tpu_custom_call.1} parent=1 // pred_check_branch
      %80 = sbr.rel (0) target = $region45
    $region44: #{tpu_custom_call.1} parent=1 // pred_region
      %81 = dma.done [#allocation6], 2048
    $region45: #{tpu_custom_call.1} parent=1 // pred_fallthru
      _
    // Predicated region
    $region46: #{tpu_custom_call.1} parent=1 // pred_check
      _
    $region47: #{tpu_custom_call.1} parent=1 // pred_check_branch
      %83 = sbr.rel (0) target = $region49
    $region48: #{tpu_custom_call.1} parent=1 // pred_region
      %84 = dma.done [#allocation9], 2048
    $region49: #{tpu_custom_call.1} parent=1 // pred_fallthru
      _
    %v85 = vld [vmem:[#allocation2] sm:$0xff]
    %v86 = vld [vmem:[#allocation2 + $0x8] sm:$0xff]
    %v87 = vld [vmem:[#allocation2 + $0x10] sm:$0xff]
    %v88 = vld [vmem:[#allocation2 + $0x18] sm:$0xff]
    %v89 = vld [vmem:[#allocation2 + $0x20] sm:$0xff]
    %v90 = vld [vmem:[#allocation2 + $0x28] sm:$0xff]
    %v91 = vld [vmem:[#allocation2 + $0x30] sm:$0xff]
    %v92 = vld [vmem:[#allocation2 + $0x38] sm:$0xff]
    %v93 = vld [vmem:[#allocation5] sm:$0xff]
    %v94 = vld [vmem:[#allocation5 + $0x8] sm:$0xff]
    %v95 = vld [vmem:[#allocation5 + $0x10] sm:$0xff]
    %v96 = vld [vmem:[#allocation5 + $0x18] sm:$0xff]
    %v97 = vld [vmem:[#allocation5 + $0x20] sm:$0xff]
    %v98 = vld [vmem:[#allocation5 + $0x28] sm:$0xff]
    %v99 = vld [vmem:[#allocation5 + $0x30] sm:$0xff]
    %v100 = vld [vmem:[#allocation5 + $0x38] sm:$0xff]
    %v101 = vld [vmem:[#allocation7] sm:$0xff]
    %v102 = vld [vmem:[#allocation7 + $0x8] sm:$0xff]
    %v103 = vld [vmem:[#allocation7 + $0x10] sm:$0xff]
    %v104 = vld [vmem:[#allocation7 + $0x18] sm:$0xff]
    %v105 = vld [vmem:[#allocation7 + $0x20] sm:$0xff]
    %v106 = vld [vmem:[#allocation7 + $0x28] sm:$0xff]
    %v107 = vld [vmem:[#allocation7 + $0x30] sm:$0xff]
    %v108 = vld [vmem:[#allocation7 + $0x38] sm:$0xff]
    %v109 = vld [vmem:[#allocation7 + $0x40] sm:$0xff]
    %v110 = vld [vmem:[#allocation7 + $0x48] sm:$0xff]
    %v111 = vld [vmem:[#allocation7 + $0x50] sm:$0xff]
    %v112 = vld [vmem:[#allocation7 + $0x58] sm:$0xff]
    %v113 = vld [vmem:[#allocation7 + $0x60] sm:$0xff]
    %v114 = vld [vmem:[#allocation7 + $0x68] sm:$0xff]
    %v115 = vld [vmem:[#allocation7 + $0x70] sm:$0xff]
    %v116 = vld [vmem:[#allocation7 + $0x78] sm:$0xff]
    %v117 = vld [vmem:[%s3] sm:$0x1]
    %v118 = vld [vmem:[%s4] sm:$0x1]
    %vm119 = vcmask 523264
    %v121 = vsel %vm119, %v85, 0
    %v124 = vsel %vm119, %v86, 0
    %v127 = vsel %vm119, %v87, 0
    %v130 = vsel %vm119, %v88, 0
    %v133 = vsel %vm119, %v89, 0
    %v136 = vsel %vm119, %v90, 0
    %v139 = vsel %vm119, %v91, 0
    %v142 = vsel %vm119, %v92, 0
    %144 = vmatprep.subr.mxu0 0.0
    %145 = vmatpush1.msra.mxu0 %v93
    %146 = vmatprep.subr.mxu0 0.0
    %147 = vmatpush1.msra.mxu0 %v94
    %148 = vmatprep.subr.mxu0 0.0
    %149 = vmatpush1.msra.mxu0 %v95
    %150 = vmatprep.subr.mxu0 0.0
    %151 = vmatpush1.msra.mxu0 %v96
    %152 = vmatprep.subr.mxu0 0.0
    %153 = vmatpush1.msra.mxu0 %v97
    %154 = vmatprep.subr.mxu0 0.0
    %155 = vmatpush1.msra.mxu0 %v98
    %156 = vmatprep.subr.mxu0 0.0
    %157 = vmatpush1.msra.mxu0 %v99
    %158 = vmatprep.subr.mxu0 0.0
    %159 = vmatpush1.msra.mxu0 %v100
    %160 = vmatprep.subr.mxu0 0.0
    %161 = vmatpush1.msra.mxu0 0.0
    %162 = vmatprep.subr.mxu0 0.0
    %163 = vmatpush1.msra.mxu0 0.0
    %164 = vmatprep.subr.mxu0 0.0
    %165 = vmatpush1.msra.mxu0 0.0
    %166 = vmatprep.subr.mxu0 0.0
    %167 = vmatpush1.msra.mxu0 0.0
    %168 = vmatprep.subr.mxu0 0.0
    %169 = vmatpush1.msra.mxu0 0.0
    %170 = vmatprep.subr.mxu0 0.0
    %171 = vmatpush1.msra.mxu0 0.0
    %172 = vmatprep.subr.mxu0 0.0
    %173 = vmatpush1.msra.mxu0 0.0
    %174 = vmatprep.subr.mxu0 0.0
    %175 = vmatpush1.msra.mxu0 0.0
    %176 = vmatprep.subr.mxu0 0.0
    %177 = vmatpush1.msra.mxu0 0.0
    %178 = vmatprep.subr.mxu0 0.0
    %179 = vmatpush1.msra.mxu0 0.0
    %180 = vmatprep.subr.mxu0 0.0
    %181 = vmatpush1.msra.mxu0 0.0
    %182 = vmatprep.subr.mxu0 0.0
    %183 = vmatpush1.msra.mxu0 0.0
    %184 = vmatprep.subr.mxu0 0.0
    %185 = vmatpush1.msra.mxu0 0.0
    %186 = vmatprep.subr.mxu0 0.0
    %187 = vmatpush1.msra.mxu0 0.0
    %188 = vmatprep.subr.mxu0 0.0
    %189 = vmatpush1.msra.mxu0 0.0
    %190 = vmatprep.subr.mxu0 0.0
    %191 = vmatpush1.msra.mxu0 0.0
    %192 = vmatprep.subr.mxu0 0.0
    %193 = vmatpush1.msra.mxu0 0.0
    %194 = vmatprep.subr.mxu0 0.0
    %195 = vmatpush1.msra.mxu0 0.0
    %196 = vmatprep.subr.mxu0 0.0
    %197 = vmatpush1.msra.mxu0 0.0
    %198 = vmatprep.subr.mxu0 0.0
    %199 = vmatpush1.msra.mxu0 0.0
    %200 = vmatprep.subr.mxu0 0.0
    %201 = vmatpush1.msra.mxu0 0.0
    %202 = vmatprep.subr.mxu0 0.0
    %203 = vmatpush1.msra.mxu0 0.0
    %204 = vmatprep.subr.mxu0 0.0
    %205 = vmatpush1.msra.mxu0 0.0
    %206 = vmatprep.subr.mxu0 0.0
    %207 = vmatpush1.msra.mxu0 0.0
    %208 = vmatprep.mubr.f32.mxu0 0.0
    %209 = vmatmul.mubr.f32.gmra.mrb[0].mxu0 %v121
    %v210 = vpop.f32.mrb[0].mxu0
    %v211 = vadd.f32 0.0, %v210
    %v212 = vpop.f32.mrb[0].mxu0
    %213 = vmatprep.mubr.f32.mxu0 0.0
    %214 = vmatmul.mubr.f32.gmra.mrb[0].mxu0 %v124
    %v215 = vpop.f32.mrb[0].mxu0
    %v216 = vadd.f32 0.0, %v215
    %v217 = vpop.f32.mrb[0].mxu0
    %218 = vmatprep.mubr.f32.mxu0 0.0
    %219 = vmatmul.mubr.f32.gmra.mrb[0].mxu0 %v127
    %v220 = vpop.f32.mrb[0].mxu0
    %v221 = vadd.f32 0.0, %v220
    %v222 = vpop.f32.mrb[0].mxu0
    %223 = vmatprep.mubr.f32.mxu0 0.0
    %224 = vmatmul.mubr.f32.gmra.mrb[0].mxu0 %v130
    %v225 = vpop.f32.mrb[0].mxu0
    %v226 = vadd.f32 0.0, %v225
    %v227 = vpop.f32.mrb[0].mxu0
    %228 = vmatprep.mubr.f32.mxu0 0.0
    %229 = vmatmul.mubr.f32.gmra.mrb[0].mxu0 %v133
    %v230 = vpop.f32.mrb[0].mxu0
    %v231 = vadd.f32 0.0, %v230
    %v232 = vpop.f32.mrb[0].mxu0
    %233 = vmatprep.mubr.f32.mxu0 0.0
    %234 = vmatmul.mubr.f32.gmra.mrb[0].mxu0 %v136
    %v235 = vpop.f32.mrb[0].mxu0
    %v236 = vadd.f32 0.0, %v235
    %v237 = vpop.f32.mrb[0].mxu0
    %238 = vmatprep.mubr.f32.mxu0 0.0
    %239 = vmatmul.mubr.f32.gmra.mrb[0].mxu0 %v139
    %v240 = vpop.f32.mrb[0].mxu0
    %v241 = vadd.f32 0.0, %v240
    %v242 = vpop.f32.mrb[0].mxu0
    %243 = vmatprep.mubr.f32.mxu0 0.0
    %244 = vmatmul.mubr.f32.gmra.mrb[0].mxu0 %v142
    %v245 = vpop.f32.mrb[0].mxu0
    %v246 = vadd.f32 0.0, %v245
    %v247 = vpop.f32.mrb[0].mxu0
    %248 = vdwg.mxu0
    %249 = vmatprep.subr.mxu0 0.0
    %250 = vmatpush1.msra.mxu0 %v101
    %251 = vmatprep.subr.mxu0 0.0
    %252 = vmatpush1.msra.mxu0 %v102
    %253 = vmatprep.subr.mxu0 0.0
    %254 = vmatpush1.msra.mxu0 %v103
    %255 = vmatprep.subr.mxu0 0.0
    %256 = vmatpush1.msra.mxu0 %v104
    %257 = vmatprep.subr.mxu0 0.0
    %258 = vmatpush1.msra.mxu0 %v105
    %259 = vmatprep.subr.mxu0 0.0
    %260 = vmatpush1.msra.mxu0 %v106
    %261 = vmatprep.subr.mxu0 0.0
    %262 = vmatpush1.msra.mxu0 %v107
    %263 = vmatprep.subr.mxu0 0.0
    %264 = vmatpush1.msra.mxu0 %v108
    %265 = vmatprep.subr.mxu0 0.0
    %266 = vmatpush1.msra.mxu0 %v109
    %267 = vmatprep.subr.mxu0 0.0
    %268 = vmatpush1.msra.mxu0 %v110
    %269 = vmatprep.subr.mxu0 0.0
    %270 = vmatpush1.msra.mxu0 %v111
    %271 = vmatprep.subr.mxu0 0.0
    %272 = vmatpush1.msra.mxu0 %v112
    %273 = vmatprep.subr.mxu0 0.0
    %274 = vmatpush1.msra.mxu0 %v113
    %275 = vmatprep.subr.mxu0 0.0
    %276 = vmatpush1.msra.mxu0 %v114
    %277 = vmatprep.subr.mxu0 0.0
    %278 = vmatpush1.msra.mxu0 %v115
    %279 = vmatprep.subr.mxu0 0.0
    %280 = vmatpush1.msra.mxu0 %v116
    %281 = vmatprep.subr.mxu0 0.0
    %282 = vmatpush1.msra.mxu0 0.0
    %283 = vmatprep.subr.mxu0 0.0
    %284 = vmatpush1.msra.mxu0 0.0
    %285 = vmatprep.subr.mxu0 0.0
    %286 = vmatpush1.msra.mxu0 0.0
    %287 = vmatprep.subr.mxu0 0.0
    %288 = vmatpush1.msra.mxu0 0.0
    %289 = vmatprep.subr.mxu0 0.0
    %290 = vmatpush1.msra.mxu0 0.0
    %291 = vmatprep.subr.mxu0 0.0
    %292 = vmatpush1.msra.mxu0 0.0
    %293 = vmatprep.subr.mxu0 0.0
    %294 = vmatpush1.msra.mxu0 0.0
    %295 = vmatprep.subr.mxu0 0.0
    %296 = vmatpush1.msra.mxu0 0.0
    %297 = vmatprep.subr.mxu0 0.0
    %298 = vmatpush1.msra.mxu0 0.0
    %299 = vmatprep.subr.mxu0 0.0
    %300 = vmatpush1.msra.mxu0 0.0
    %301 = vmatprep.subr.mxu0 0.0
    %302 = vmatpush1.msra.mxu0 0.0
    %303 = vmatprep.subr.mxu0 0.0
    %304 = vmatpush1.msra.mxu0 0.0
    %305 = vmatprep.subr.mxu0 0.0
    %306 = vmatpush1.msra.mxu0 0.0
    %307 = vmatprep.subr.mxu0 0.0
    %308 = vmatpush1.msra.mxu0 0.0
    %309 = vmatprep.subr.mxu0 0.0
    %310 = vmatpush1.msra.mxu0 0.0
    %311 = vmatprep.subr.mxu0 0.0
    %312 = vmatpush1.msra.mxu0 0.0
    %313 = vmatprep.mubr.f32.mxu0 0.0
    %314 = vmatmul.mubr.f32.gmra.mrb[0].mxu0 %v211
    %v315 = vpop.f32.mrb[0].mxu0
    %v316 = vadd.f32 0.0, %v315
    %v317 = vpop.f32.mrb[0].mxu0
    %318 = vmatprep.mubr.f32.mxu0 0.0
    %319 = vmatmul.mubr.f32.gmra.mrb[0].mxu0 %v216
    %v320 = vpop.f32.mrb[0].mxu0
    %v321 = vadd.f32 0.0, %v320
    %v322 = vpop.f32.mrb[0].mxu0
    %323 = vmatprep.mubr.f32.mxu0 0.0
    %324 = vmatmul.mubr.f32.gmra.mrb[0].mxu0 %v221
    %v325 = vpop.f32.mrb[0].mxu0
    %v326 = vadd.f32 0.0, %v325
    %v327 = vpop.f32.mrb[0].mxu0
    %328 = vmatprep.mubr.f32.mxu0 0.0
    %329 = vmatmul.mubr.f32.gmra.mrb[0].mxu0 %v226
    %v330 = vpop.f32.mrb[0].mxu0
    %v331 = vadd.f32 0.0, %v330
    %v332 = vpop.f32.mrb[0].mxu0
    %333 = vmatprep.mubr.f32.mxu0 0.0
    %334 = vmatmul.mubr.f32.gmra.mrb[0].mxu0 %v231
    %v335 = vpop.f32.mrb[0].mxu0
    %v336 = vadd.f32 0.0, %v335
    %v337 = vpop.f32.mrb[0].mxu0
    %338 = vmatprep.mubr.f32.mxu0 0.0
    %339 = vmatmul.mubr.f32.gmra.mrb[0].mxu0 %v236
    %v340 = vpop.f32.mrb[0].mxu0
    %v341 = vadd.f32 0.0, %v340
    %v342 = vpop.f32.mrb[0].mxu0
    %343 = vmatprep.mubr.f32.mxu0 0.0
    %344 = vmatmul.mubr.f32.gmra.mrb[0].mxu0 %v241
    %v345 = vpop.f32.mrb[0].mxu0
    %v346 = vadd.f32 0.0, %v345
    %v347 = vpop.f32.mrb[0].mxu0
    %348 = vmatprep.mubr.f32.mxu0 0.0
    %349 = vmatmul.mubr.f32.gmra.mrb[0].mxu0 %v246
    %v350 = vpop.f32.mrb[0].mxu0
    %v351 = vadd.f32 0.0, %v350
    %v352 = vpop.f32.mrb[0].mxu0
    %353 = vdwg.mxu0
    %v354 = vadd.f32 %v316, %v321
    %v355 = vadd.f32 %v354, %v326
    %v356 = vadd.f32 %v355, %v331
    %v357 = vadd.f32 %v356, %v336
    %v358 = vadd.f32 %v357, %v341
    %v359 = vadd.f32 %v358, %v346
    %v360 = vadd.f32 %v359, %v351
    %v361 = vrot.slane %v360, 4
    %v362 = vadd.f32 %v360, %v361
    %v363 = vrot.slane %v362, 2
    %v364 = vadd.f32 %v362, %v363
    %v365 = vrot.slane %v364, 1
    %v366 = vadd.f32 %v364, %v365
    %v367 = vrcp.pop 64.0
    %v368 = vmul.f32 %v366, %v367
    %v369 = vmul.f32 %v316, %v316
    %v370 = vmul.f32 %v321, %v321
    %v371 = vmul.f32 %v326, %v326
    %v372 = vmul.f32 %v331, %v331
    %v373 = vmul.f32 %v336, %v336
    %v374 = vmul.f32 %v341, %v341
    %v375 = vmul.f32 %v346, %v346
    %v376 = vmul.f32 %v351, %v351
    %v377 = vadd.f32 %v369, %v370
    %v378 = vadd.f32 %v377, %v371
    %v379 = vadd.f32 %v378, %v372
    %v380 = vadd.f32 %v379, %v373
    %v381 = vadd.f32 %v380, %v374
    %v382 = vadd.f32 %v381, %v375
    %v383 = vadd.f32 %v382, %v376
    %v384 = vrot.slane %v383, 4
    %v385 = vadd.f32 %v383, %v384
    %v386 = vrot.slane %v385, 2
    %v387 = vadd.f32 %v385, %v386
    %v388 = vrot.slane %v387, 1
    %v389 = vadd.f32 %v387, %v388
    %v390 = vmul.f32 %v389, %v367
    %v391 = vmul.f32 %v368, %v368
    %v392 = vsub.f32 %v390, %v391
    %v393 = vmax.f32 %v392, 0.0
    %v394 = vadd.f32 %v393, 1e-05
    %v395 = vrsqrt.pop %v394
    %v396 = vmul.f32 %v117, %v395
    %v397 = vmul.f32 %v368, %v396
    %v398 = vsub.f32 %v118, %v397
    %v400 = vlaneseq
    %v401 = vshrl.u32 %v400, 7
    %v402 = vsub.s32 0, %v401
    %v403 = vrot.slane %v396, %v402
    %v405 = vmul.f32 %v316, %v403
    %v406 = vmul.f32 %v321, %v403
    %v407 = vmul.f32 %v326, %v403
    %v408 = vmul.f32 %v331, %v403
    %v409 = vmul.f32 %v336, %v403
    %v410 = vmul.f32 %v341, %v403
    %v411 = vmul.f32 %v346, %v403
    %v412 = vmul.f32 %v351, %v403
    %v414 = vlaneseq
    %v415 = vshrl.u32 %v414, 7
    %v416 = vsub.s32 0, %v415
    %v417 = vrot.slane %v398, %v416
    %v419 = vadd.f32 %v405, %v417
    %v420 = vadd.f32 %v406, %v417
    %v421 = vadd.f32 %v407, %v417
    %v422 = vadd.f32 %v408, %v417
    %v423 = vadd.f32 %v409, %v417
    %v424 = vadd.f32 %v410, %v417
    %v425 = vadd.f32 %v411, %v417
    %v426 = vadd.f32 %v412, %v417
    %v427 = vmax.f32 %v419, 0.0
    %v428 = vmax.f32 %v420, 0.0
    %v429 = vmax.f32 %v421, 0.0
    %v430 = vmax.f32 %v422, 0.0
    %v431 = vmax.f32 %v423, 0.0
    %v432 = vmax.f32 %v424, 0.0
    %v433 = vmax.f32 %v425, 0.0
    %v434 = vmax.f32 %v426, 0.0
    %v435 = vld [vmem:[#allocation8] sm:$0xff]
    %v436 = vld [vmem:[#allocation8 + $0x8] sm:$0xff]
    %v437 = vld [vmem:[#allocation8 + $0x10] sm:$0xff]
    %v438 = vld [vmem:[#allocation8 + $0x18] sm:$0xff]
    %v439 = vld [vmem:[#allocation8 + $0x20] sm:$0xff]
    %v440 = vld [vmem:[#allocation8 + $0x28] sm:$0xff]
    %v441 = vld [vmem:[#allocation8 + $0x30] sm:$0xff]
    %v442 = vld [vmem:[#allocation8 + $0x38] sm:$0xff]
    %v443 = vld [vmem:[#allocation8 + $0x40] sm:$0xff]
    %v444 = vld [vmem:[#allocation8 + $0x48] sm:$0xff]
    %v445 = vld [vmem:[#allocation8 + $0x50] sm:$0xff]
    %v446 = vld [vmem:[#allocation8 + $0x58] sm:$0xff]
    %v447 = vld [vmem:[#allocation8 + $0x60] sm:$0xff]
    %v448 = vld [vmem:[#allocation8 + $0x68] sm:$0xff]
    %v449 = vld [vmem:[#allocation8 + $0x70] sm:$0xff]
    %v450 = vld [vmem:[#allocation8 + $0x78] sm:$0xff]
    %v451 = vld [vmem:[%s6] sm:$0x1]
    %v452 = vld [vmem:[%s7] sm:$0x1]
    %453 = vmatprep.subr.mxu0 0.0
    %454 = vmatpush1.msra.mxu0 %v427
    %455 = vmatprep.subr.mxu0 0.0
    %456 = vmatpush1.msra.mxu0 %v428
    %457 = vmatprep.subr.mxu0 0.0
    %458 = vmatpush1.msra.mxu0 %v429
    %459 = vmatprep.subr.mxu0 0.0
    %460 = vmatpush1.msra.mxu0 %v430
    %461 = vmatprep.subr.mxu0 0.0
    %462 = vmatpush1.msra.mxu0 %v431
    %463 = vmatprep.subr.mxu0 0.0
    %464 = vmatpush1.msra.mxu0 %v432
    %465 = vmatprep.subr.mxu0 0.0
    %466 = vmatpush1.msra.mxu0 %v433
    %467 = vmatprep.subr.mxu0 0.0
    %468 = vmatpush1.msra.mxu0 %v434
    %469 = vmatprep.subr.mxu0 0.0
    %470 = vmatpush1.msra.mxu0 0.0
    %471 = vmatprep.subr.mxu0 0.0
    %472 = vmatpush1.msra.mxu0 0.0
    %473 = vmatprep.subr.mxu0 0.0
    %474 = vmatpush1.msra.mxu0 0.0
    %475 = vmatprep.subr.mxu0 0.0
    %476 = vmatpush1.msra.mxu0 0.0
    %477 = vmatprep.subr.mxu0 0.0
    %478 = vmatpush1.msra.mxu0 0.0
    %479 = vmatprep.subr.mxu0 0.0
    %480 = vmatpush1.msra.mxu0 0.0
    %481 = vmatprep.subr.mxu0 0.0
    %482 = vmatpush1.msra.mxu0 0.0
    %483 = vmatprep.subr.mxu0 0.0
    %484 = vmatpush1.msra.mxu0 0.0
    %485 = vmatprep.subr.mxu0 0.0
    %486 = vmatpush1.msra.mxu0 0.0
    %487 = vmatprep.subr.mxu0 0.0
    %488 = vmatpush1.msra.mxu0 0.0
    %489 = vmatprep.subr.mxu0 0.0
    %490 = vmatpush1.msra.mxu0 0.0
    %491 = vmatprep.subr.mxu0 0.0
    %492 = vmatpush1.msra.mxu0 0.0
    %493 = vmatprep.subr.mxu0 0.0
    %494 = vmatpush1.msra.mxu0 0.0
    %495 = vmatprep.subr.mxu0 0.0
    %496 = vmatpush1.msra.mxu0 0.0
    %497 = vmatprep.subr.mxu0 0.0
    %498 = vmatpush1.msra.mxu0 0.0
    %499 = vmatprep.subr.mxu0 0.0
    %500 = vmatpush1.msra.mxu0 0.0
    %501 = vmatprep.subr.mxu0 0.0
    %502 = vmatpush1.msra.mxu0 0.0
    %503 = vmatprep.subr.mxu0 0.0
    %504 = vmatpush1.msra.mxu0 0.0
    %505 = vmatprep.subr.mxu0 0.0
    %506 = vmatpush1.msra.mxu0 0.0
    %507 = vmatprep.subr.mxu0 0.0
    %508 = vmatpush1.msra.mxu0 0.0
    %509 = vmatprep.subr.mxu0 0.0
    %510 = vmatpush1.msra.mxu0 0.0
    %511 = vmatprep.subr.mxu0 0.0
    %512 = vmatpush1.msra.mxu0 0.0
    %513 = vmatprep.subr.mxu0 0.0
    %514 = vmatpush1.msra.mxu0 0.0
    %515 = vmatprep.subr.mxu0 0.0
    %516 = vmatpush1.msra.mxu0 0.0
    %517 = vmatprep.mubr.f32.mxu0 0.0
    %518 = vmatmul.mubr.f32.gmra.mrb[0].mxu0 %v121
    %v519 = vpop.f32.mrb[0].mxu0
    %v520 = vadd.f32 0.0, %v519
    %v521 = vpop.f32.mrb[0].mxu0
    %522 = vmatprep.mubr.f32.mxu0 0.0
    %523 = vmatmul.mubr.f32.gmra.mrb[0].mxu0 %v124
    %v524 = vpop.f32.mrb[0].mxu0
    %v525 = vadd.f32 0.0, %v524
    %v526 = vpop.f32.mrb[0].mxu0
    %527 = vmatprep.mubr.f32.mxu0 0.0
    %528 = vmatmul.mubr.f32.gmra.mrb[0].mxu0 %v127
    %v529 = vpop.f32.mrb[0].mxu0
    %v530 = vadd.f32 0.0, %v529
    %v531 = vpop.f32.mrb[0].mxu0
    %532 = vmatprep.mubr.f32.mxu0 0.0
    %533 = vmatmul.mubr.f32.gmra.mrb[0].mxu0 %v130
    %v534 = vpop.f32.mrb[0].mxu0
    %v535 = vadd.f32 0.0, %v534
    %v536 = vpop.f32.mrb[0].mxu0
    %537 = vmatprep.mubr.f32.mxu0 0.0
    %538 = vmatmul.mubr.f32.gmra.mrb[0].mxu0 %v133
    %v539 = vpop.f32.mrb[0].mxu0
    %v540 = vadd.f32 0.0, %v539
    %v541 = vpop.f32.mrb[0].mxu0
    %542 = vmatprep.mubr.f32.mxu0 0.0
    %543 = vmatmul.mubr.f32.gmra.mrb[0].mxu0 %v136
    %v544 = vpop.f32.mrb[0].mxu0
    %v545 = vadd.f32 0.0, %v544
    %v546 = vpop.f32.mrb[0].mxu0
    %547 = vmatprep.mubr.f32.mxu0 0.0
    %548 = vmatmul.mubr.f32.gmra.mrb[0].mxu0 %v139
    %v549 = vpop.f32.mrb[0].mxu0
    %v550 = vadd.f32 0.0, %v549
    %v551 = vpop.f32.mrb[0].mxu0
    %552 = vmatprep.mubr.f32.mxu0 0.0
    %553 = vmatmul.mubr.f32.gmra.mrb[0].mxu0 %v142
    %v554 = vpop.f32.mrb[0].mxu0
    %v555 = vadd.f32 0.0, %v554
    %v556 = vpop.f32.mrb[0].mxu0
    %557 = vdwg.mxu0
    %558 = vmatprep.subr.mxu0 0.0
    %559 = vmatpush1.msra.mxu0 %v435
    %560 = vmatprep.subr.mxu0 0.0
    %561 = vmatpush1.msra.mxu0 %v436
    %562 = vmatprep.subr.mxu0 0.0
    %563 = vmatpush1.msra.mxu0 %v437
    %564 = vmatprep.subr.mxu0 0.0
    %565 = vmatpush1.msra.mxu0 %v438
    %566 = vmatprep.subr.mxu0 0.0
    %567 = vmatpush1.msra.mxu0 %v439
    %568 = vmatprep.subr.mxu0 0.0
    %569 = vmatpush1.msra.mxu0 %v440
    %570 = vmatprep.subr.mxu0 0.0
    %571 = vmatpush1.msra.mxu0 %v441
    %572 = vmatprep.subr.mxu0 0.0
    %573 = vmatpush1.msra.mxu0 %v442
    %574 = vmatprep.subr.mxu0 0.0
    %575 = vmatpush1.msra.mxu0 %v443
    %576 = vmatprep.subr.mxu0 0.0
    %577 = vmatpush1.msra.mxu0 %v444
    %578 = vmatprep.subr.mxu0 0.0
    %579 = vmatpush1.msra.mxu0 %v445
    %580 = vmatprep.subr.mxu0 0.0
    %581 = vmatpush1.msra.mxu0 %v446
    %582 = vmatprep.subr.mxu0 0.0
    %583 = vmatpush1.msra.mxu0 %v447
    %584 = vmatprep.subr.mxu0 0.0
    %585 = vmatpush1.msra.mxu0 %v448
    %586 = vmatprep.subr.mxu0 0.0
    %587 = vmatpush1.msra.mxu0 %v449
    %588 = vmatprep.subr.mxu0 0.0
    %589 = vmatpush1.msra.mxu0 %v450
    %590 = vmatprep.subr.mxu0 0.0
    %591 = vmatpush1.msra.mxu0 0.0
    %592 = vmatprep.subr.mxu0 0.0
    %593 = vmatpush1.msra.mxu0 0.0
    %594 = vmatprep.subr.mxu0 0.0
    %595 = vmatpush1.msra.mxu0 0.0
    %596 = vmatprep.subr.mxu0 0.0
    %597 = vmatpush1.msra.mxu0 0.0
    %598 = vmatprep.subr.mxu0 0.0
    %599 = vmatpush1.msra.mxu0 0.0
    %600 = vmatprep.subr.mxu0 0.0
    %601 = vmatpush1.msra.mxu0 0.0
    %602 = vmatprep.subr.mxu0 0.0
    %603 = vmatpush1.msra.mxu0 0.0
    %604 = vmatprep.subr.mxu0 0.0
    %605 = vmatpush1.msra.mxu0 0.0
    %606 = vmatprep.subr.mxu0 0.0
    %607 = vmatpush1.msra.mxu0 0.0
    %608 = vmatprep.subr.mxu0 0.0
    %609 = vmatpush1.msra.mxu0 0.0
    %610 = vmatprep.subr.mxu0 0.0
    %611 = vmatpush1.msra.mxu0 0.0
    %612 = vmatprep.subr.mxu0 0.0
    %613 = vmatpush1.msra.mxu0 0.0
    %614 = vmatprep.subr.mxu0 0.0
    %615 = vmatpush1.msra.mxu0 0.0
    %616 = vmatprep.subr.mxu0 0.0
    %617 = vmatpush1.msra.mxu0 0.0
    %618 = vmatprep.subr.mxu0 0.0
    %619 = vmatpush1.msra.mxu0 0.0
    %620 = vmatprep.subr.mxu0 0.0
    %621 = vmatpush1.msra.mxu0 0.0
    %622 = vmatprep.mubr.f32.mxu0 0.0
    %623 = vmatmul.mubr.f32.gmra.mrb[0].mxu0 %v520
    %v624 = vpop.f32.mrb[0].mxu0
    %v625 = vadd.f32 0.0, %v624
    %v626 = vpop.f32.mrb[0].mxu0
    %627 = vmatprep.mubr.f32.mxu0 0.0
    %628 = vmatmul.mubr.f32.gmra.mrb[0].mxu0 %v525
    %v629 = vpop.f32.mrb[0].mxu0
    %v630 = vadd.f32 0.0, %v629
    %v631 = vpop.f32.mrb[0].mxu0
    %632 = vmatprep.mubr.f32.mxu0 0.0
    %633 = vmatmul.mubr.f32.gmra.mrb[0].mxu0 %v530
    %v634 = vpop.f32.mrb[0].mxu0
    %v635 = vadd.f32 0.0, %v634
    %v636 = vpop.f32.mrb[0].mxu0
    %637 = vmatprep.mubr.f32.mxu0 0.0
    %638 = vmatmul.mubr.f32.gmra.mrb[0].mxu0 %v535
    %v639 = vpop.f32.mrb[0].mxu0
    %v640 = vadd.f32 0.0, %v639
    %v641 = vpop.f32.mrb[0].mxu0
    %642 = vmatprep.mubr.f32.mxu0 0.0
    %643 = vmatmul.mubr.f32.gmra.mrb[0].mxu0 %v540
    %v644 = vpop.f32.mrb[0].mxu0
    %v645 = vadd.f32 0.0, %v644
    %v646 = vpop.f32.mrb[0].mxu0
    %647 = vmatprep.mubr.f32.mxu0 0.0
    %648 = vmatmul.mubr.f32.gmra.mrb[0].mxu0 %v545
    %v649 = vpop.f32.mrb[0].mxu0
    %v650 = vadd.f32 0.0, %v649
    %v651 = vpop.f32.mrb[0].mxu0
    %652 = vmatprep.mubr.f32.mxu0 0.0
    %653 = vmatmul.mubr.f32.gmra.mrb[0].mxu0 %v550
    %v654 = vpop.f32.mrb[0].mxu0
    %v655 = vadd.f32 0.0, %v654
    %v656 = vpop.f32.mrb[0].mxu0
    %657 = vmatprep.mubr.f32.mxu0 0.0
    %658 = vmatmul.mubr.f32.gmra.mrb[0].mxu0 %v555
    %v659 = vpop.f32.mrb[0].mxu0
    %v660 = vadd.f32 0.0, %v659
    %v661 = vpop.f32.mrb[0].mxu0
    %662 = vdwg.mxu0
    %v663 = vadd.f32 %v625, %v630
    %v664 = vadd.f32 %v663, %v635
    %v665 = vadd.f32 %v664, %v640
    %v666 = vadd.f32 %v665, %v645
    %v667 = vadd.f32 %v666, %v650
    %v668 = vadd.f32 %v667, %v655
    %v669 = vadd.f32 %v668, %v660
    %v670 = vrot.slane %v669, 4
    %v671 = vadd.f32 %v669, %v670
    %v672 = vrot.slane %v671, 2
    %v673 = vadd.f32 %v671, %v672
    %v674 = vrot.slane %v673, 1
    %v675 = vadd.f32 %v673, %v674
    %v676 = vmul.f32 %v675, %v367
    %v677 = vmul.f32 %v625, %v625
    %v678 = vmul.f32 %v630, %v630
    %v679 = vmul.f32 %v635, %v635
    %v680 = vmul.f32 %v640, %v640
    %v681 = vmul.f32 %v645, %v645
    %v682 = vmul.f32 %v650, %v650
    %v683 = vmul.f32 %v655, %v655
    %v684 = vmul.f32 %v660, %v660
    %v685 = vadd.f32 %v677, %v678
    %v686 = vadd.f32 %v685, %v679
    %v687 = vadd.f32 %v686, %v680
    %v688 = vadd.f32 %v687, %v681
    %v689 = vadd.f32 %v688, %v682
    %v690 = vadd.f32 %v689, %v683
    %v691 = vadd.f32 %v690, %v684
    %v692 = vrot.slane %v691, 4
    %v693 = vadd.f32 %v691, %v692
    %v694 = vrot.slane %v693, 2
    %v695 = vadd.f32 %v693, %v694
    %v696 = vrot.slane %v695, 1
    %v697 = vadd.f32 %v695, %v696
    %v698 = vmul.f32 %v697, %v367
    %v699 = vmul.f32 %v676, %v676
    %v700 = vsub.f32 %v698, %v699
    %v701 = vmax.f32 %v700, 0.0
    %v702 = vadd.f32 %v701, 1e-05
    %v703 = vrsqrt.pop %v702
    %v704 = vmul.f32 %v451, %v703
    %v705 = vmul.f32 %v676, %v704
    %v706 = vsub.f32 %v452, %v705
    %v708 = vlaneseq
    %v709 = vshrl.u32 %v708, 7
    %v710 = vsub.s32 0, %v709
    %v711 = vrot.slane %v704, %v710
    %v713 = vmul.f32 %v625, %v711
    %v714 = vmul.f32 %v630, %v711
    %v715 = vmul.f32 %v635, %v711
    %v716 = vmul.f32 %v640, %v711
    %v717 = vmul.f32 %v645, %v711
    %v718 = vmul.f32 %v650, %v711
    %v719 = vmul.f32 %v655, %v711
    %v720 = vmul.f32 %v660, %v711
    %v722 = vlaneseq
    %v723 = vshrl.u32 %v722, 7
    %v724 = vsub.s32 0, %v723
    %v725 = vrot.slane %v706, %v724
    %v727 = vadd.f32 %v713, %v725
    %v728 = vadd.f32 %v714, %v725
    %v729 = vadd.f32 %v715, %v725
    %v730 = vadd.f32 %v716, %v725
    %v731 = vadd.f32 %v717, %v725
    %v732 = vadd.f32 %v718, %v725
    %v733 = vadd.f32 %v719, %v725
    %v734 = vadd.f32 %v720, %v725
    %735 = vst [vmem:[#allocation10] sm:$0xff] %v727
    %736 = vst [vmem:[#allocation10 + $0x8] sm:$0xff] %v728
    %737 = vst [vmem:[#allocation10 + $0x10] sm:$0xff] %v729
    %738 = vst [vmem:[#allocation10 + $0x18] sm:$0xff] %v730
    %739 = vst [vmem:[#allocation10 + $0x20] sm:$0xff] %v731
    %740 = vst [vmem:[#allocation10 + $0x28] sm:$0xff] %v732
    %741 = vst [vmem:[#allocation10 + $0x30] sm:$0xff] %v733
    %742 = vst [vmem:[#allocation10 + $0x38] sm:$0xff] %v734
    // Predicated region
    $region50: #{tpu_custom_call.1} parent=1 // pred_check
      _
    $region51: #{tpu_custom_call.1} parent=1 // pred_check_branch
      %744 = sbr.rel (0) target = $region53
    $region52: #{tpu_custom_call.1} parent=1 // pred_region
      %s746 = ssub.s32 1024, 1024
      %747 = vsyncadd [#allocation4], %s746
      %s748 = sshll.u32 [#allocation10], 4
      %s749 = int_to_ptr.vmem [resolvable:$true] %s748
      %754 = dma.vmem_to_hbm [thread:$0]  %s749, 1024, %s8, [#allocation4], 128, 128, 8
    $region53: #{tpu_custom_call.1} parent=1 // pred_fallthru
      _
    // Predicated region
    $region54: #{tpu_custom_call.1} parent=1 // pred_check
      _
    $region55: #{tpu_custom_call.1} parent=1 // pred_check_branch
      %756 = sbr.rel (0) target = $region57
    $region56: #{tpu_custom_call.1} parent=1 // pred_region
      %757 = dma.done [#allocation4], 1024
    $region57: #{tpu_custom_call.1} parent=1 // pred_fallthru
      _
    %758 = vsyncpa [#allocation3], 1
    %759 = vsyncpa [#allocation6], 1
    %760 = vsyncpa [#allocation9], 1
    %761 = vsyncpa [#allocation4], 1

</llo_original>
